<compile_context>
chip_gen: v6e
topology: v6e:2x2x1
jax: 0.10.0
libtpu: 0.0.40
codegen_flags: <defaults>
</compile_context>

<pallas_src>
import functools
import math

import numpy as np

import jax
import jax.numpy as jnp
from jax.experimental import pallas as pl
from jax.experimental.pallas import tpu as pltpu

_EPS = 1e-12  # matches torch.nn.functional.normalize default eps


def _round_up(x, m):
    return ((x + m - 1) // m) * m


def _vmem_capacity_bytes():
    try:
        return int(pltpu.get_tpu_info().vmem_capacity_bytes)
    except Exception:
        return 64 << 20  # conservative fallback (v7x per-TensorCore VMEM)


def _usable_vmem():
    cap = _vmem_capacity_bytes()
    # Leave headroom for compiler scratch / semaphores; never below 32 MiB.
    return max(32 << 20, cap - (12 << 20)), cap


def _pick_row_tile(total_rows, min_mult, max_tile, e, in_item, out_item, budget):
    """Largest row tile <= max_tile that is a multiple of min_mult, divides
    total_rows and (double-buffered in+out) fits the VMEM budget."""
    t = min(max_tile, total_rows)
    t = max(min_mult, (t // min_mult) * min_mult)
    while total_rows % t != 0:
        t -= min_mult

    def fits(tt):
        return 2 * tt * e * (in_item + out_item) <= budget

    while t > min_mult and not fits(t):
        nt = max(min_mult, ((t // 2) // min_mult) * min_mult)
        while total_rows % nt != 0:
            nt -= min_mult
        if nt >= t:
            break
        t = nt
    return t


# --------------------------------------------------------------------------
# Prep kernel: row-wise L2 normalization (+ optional scale fold) + cast.
# Used once for W (scale folded) and once for f (scale = 1.0).
# --------------------------------------------------------------------------
def _normalize_scale_kernel(x_ref, o_ref, *, scale):
    x = x_ref[...].astype(jnp.float32)
    sumsq = jnp.sum(x * x, axis=-1, keepdims=True)
    # x / max(||x||, eps) == x * rsqrt(max(||x||^2, eps^2)); rsqrt is a single
    # EUP op.
    inv = jax.lax.rsqrt(jnp.maximum(sumsq, _EPS * _EPS))
    o_ref[...] = (x * (scale * inv)).astype(o_ref.dtype)


def _l2_normalize_rows_padded(x_padded, scale, *, out_dtype, row_tile):
    R, E = x_padded.shape
    assert R % row_tile == 0
    _, cap = _usable_vmem()
    in_item = np.dtype(x_padded.dtype).itemsize
    out_item = np.dtype(out_dtype).itemsize
    need = 2 * row_tile * E * (in_item + out_item)
    vmem_limit = int(min(max(need + (4 << 20), 16 << 20), cap - (4 << 20)))
    return pl.pallas_call(
        functools.partial(_normalize_scale_kernel, scale=float(scale)),
        out_shape=jax.ShapeDtypeStruct((R, E), out_dtype),
        grid_spec=pltpu.PrefetchScalarGridSpec(
            num_scalar_prefetch=0,
            grid=(R // row_tile,),
            in_specs=[pl.BlockSpec((row_tile, E), lambda i: (i, 0))],
            out_specs=pl.BlockSpec((row_tile, E), lambda i: (i, 0)),
        ),
        compiler_params=pltpu.CompilerParams(
            dimension_semantics=("parallel",),
            vmem_limit_bytes=vmem_limit),
    )(x_padded)


def prepare_cos_scratch_weights(w, scale, *, out_dtype=jnp.bfloat16,
                                max_tile_rows=512):
    """One-time W prep: pad rows to a multiple of 256, L2-normalize rows,
    fold `scale`, emit `out_dtype`. Cache the result when W is static."""
    C, E = w.shape
    C_pad = _round_up(C, 256)
    w_p = w if C_pad == C else jnp.pad(w, ((0, C_pad - C), (0, 0)))
    usable, _ = _usable_vmem()
    tile = _pick_row_tile(C_pad, 128, max_tile_rows, E,
                          np.dtype(w_p.dtype).itemsize,
                          np.dtype(out_dtype).itemsize, usable)
    return _l2_normalize_rows_padded(w_p, scale, out_dtype=out_dtype,
                                     row_tile=tile)


# --------------------------------------------------------------------------
# Hot kernel: one (tile_b, tile_c) logit tile = pure MXU matmul.
#   f_ref: (tile_b, E) pre-normalized features (compute dtype)
#   w_ref: (tile_c, E) pre-normalized, scale-folded weights (compute dtype)
#   o_ref: (tile_b, tile_c) f32 logits
# --------------------------------------------------------------------------
def _cos_matmul_kernel(f_ref, w_ref, o_ref):
    o_ref[...] = jax.lax.dot_general(
        f_ref[...], w_ref[...],
        dimension_numbers=(((1,), (1,)), ((), ())),
        preferred_element_type=jnp.float32)


def cos_scratch_apply(f, w_norm, n_cla, *, tile_b=512, tile_c=512):
    """Apply the classifier given pre-normalized/scale-folded weights.

    f: (B, E) raw features; w_norm: (C_pad, E) from prepare_cos_scratch_weights.
    Returns (B, n_cla) float32 logits.
    """
    B, E = f.shape
    C_pad, E2 = w_norm.shape
    assert E == E2, "embedding dims must match"
    assert C_pad % 128 == 0 and n_cla <= C_pad

    usable, cap = _usable_vmem()
    compute_dtype = w_norm.dtype
    f_item = np.dtype(compute_dtype).itemsize
    w_item = np.dtype(compute_dtype).itemsize

    # ---- batch tile: multiple of 8 (f32) / 16 (bf16); prefer 256-aligned
    # (v6e/v7x MXU) when it does not increase padding. --------------------
    b_mult = 8 if f_item >= 4 else 16
    B0 = _round_up(B, b_mult)
    tb = min(tile_b, B0)
    tb = max(b_mult, (tb // b_mult) * b_mult)
    if tb >= 256:
        tb256 = (tb // 256) * 256
        if _round_up(B, tb256) <= _round_up(B, tb):
            tb = tb256

    # ---- class tile: multiple of 128 that divides C_pad -----------------
    tc = min(tile_c, C_pad)
    tc = max(128, (tc // 128) * 128)
    while C_pad % tc != 0:
        tc -= 128

    # ---- shrink tiles (not the limit) if over the VMEM budget -----------
    def need(tb_, tc_):
        return 2 * (tb_ * E * f_item + tc_ * E * w_item + tb_ * tc_ * 4)

    while need(tb, tc) > usable:
        if tc > 128:
            nt = max(128, ((tc // 2) // 128) * 128)
            while C_pad % nt != 0:
                nt -= 128
            if nt < tc:
                tc = nt
                continue
        if tb > b_mult:
            tb = max(b_mult, ((tb // 2) // b_mult) * b_mult)
            continue
        break

    B_pad = _round_up(B, tb)

    # ---- feature prep: normalize once, cast to compute dtype ------------
    f_p = f if B_pad == B else jnp.pad(f, ((0, B_pad - B), (0, 0)))
    f_row_tile = _pick_row_tile(B_pad, b_mult, tb, E,
                                np.dtype(f_p.dtype).itemsize, f_item, usable)
    f_norm = _l2_normalize_rows_padded(f_p, 1.0, out_dtype=compute_dtype,
                                       row_tile=f_row_tile)

    n_b = B_pad // tb
    n_c = C_pad // tc

    # ---- grid order: keep the operand with the larger total HBM traffic
    # resident on the outer axis, stream the smaller one on the inner axis.
    traffic_batch_outer = n_b * C_pad * E * w_item + B_pad * E * f_item
    traffic_class_outer = n_c * B_pad * E * f_item + C_pad * E * w_item
    if traffic_batch_outer <= traffic_class_outer:
        grid = (n_b, n_c)                 # f resident, W streamed
        f_map = lambda i, j: (i, 0)
        w_map = lambda i, j: (j, 0)
        o_map = lambda i, j: (i, j)
    else:
        grid = (n_c, n_b)                 # W resident, f streamed
        f_map = lambda j, i: (i, 0)
        w_map = lambda j, i: (j, 0)
        o_map = lambda j, i: (i, j)

    vmem_limit = int(min(max(need(tb, tc) + (8 << 20), 32 << 20),
                         cap - (4 << 20)))

    out = pl.pallas_call(
        _cos_matmul_kernel,
        out_shape=jax.ShapeDtypeStruct((B_pad, C_pad), jnp.float32),
        grid_spec=pltpu.PrefetchScalarGridSpec(
            num_scalar_prefetch=0,
            grid=grid,
            in_specs=[
                pl.BlockSpec((tb, E), f_map),
                pl.BlockSpec((tc, E), w_map),
            ],
            out_specs=pl.BlockSpec((tb, tc), o_map),
        ),
        compiler_params=pltpu.CompilerParams(
            dimension_semantics=("parallel", "parallel"),
            vmem_limit_bytes=vmem_limit),
    )(f_norm, w_norm)

    if B_pad == B and C_pad == n_cla:
        return out
    return out[:B, :n_cla]


def cos_scratch_forward(f, w, scale, *, tile_b=512, tile_c=512,
                        compute_dtype=jnp.bfloat16):
    """Pallas implementation of CosScratch.forward.

    For repeated calls with static W, call prepare_cos_scratch_weights once
    and reuse its output with cos_scratch_apply instead.
    """
    w_norm = prepare_cos_scratch_weights(w, scale, out_dtype=compute_dtype,
                                         max_tile_rows=tile_c)
    return cos_scratch_apply(f, w_norm, w.shape[0],
                             tile_b=tile_b, tile_c=tile_c)


def init_fc_weight(key, n_cla, emb_size):
    """kaiming_uniform_(a=sqrt(5)) on (n_cla, emb_size): bound = 1/sqrt(fan_in)."""
    bound = 1.0 / math.sqrt(emb_size)
    return jax.random.uniform(
        key, (n_cla, emb_size), dtype=jnp.float32, minval=-bound, maxval=bound)


def reference_forward(f, w, scale):
    f_n = f / jnp.maximum(jnp.linalg.norm(f, axis=-1, keepdims=True), _EPS)
    w_n = w / jnp.maximum(jnp.linalg.norm(w, axis=-1, keepdims=True), _EPS)
    return (f_n @ w_n.T) * scale


if __name__ == "__main__":
    scale = 100.0
    key = jax.random.PRNGKey(0)
    k_f, k_w, k_f2, k_w2 = jax.random.split(key, 4)

    # --- small deterministic case: batch=8, emb_size=256, n_cla=16 ---------
    B, E, C = 8, 256, 16
    f = jax.random.normal(k_f, (B, E), dtype=jnp.float32)
    w = init_fc_weight(k_w, C, E)
    ref = reference_forward(f, w, scale)

    # bf16 matmul operands (default fast path); f32 accumulation.
    out = jax.block_until_ready(cos_scratch_forward(f, w, scale))
    assert out.shape == (B, C)
    assert jnp.allclose(out, ref, atol=2.0, rtol=5e-2), "bf16 path mismatch"

    # f32 matmul operands (exact-ish vs reference).
    out_f32 = jax.block_until_ready(
        cos_scratch_forward(f, w, scale, compute_dtype=jnp.float32))
    assert out_f32.shape == (B, C)
    assert jnp.allclose(out_f32, ref, atol=1e-3, rtol=1e-3), "f32 path mismatch"

    # Cached-weight path (prep once, apply many times).
    w_norm = prepare_cos_scratch_weights(w, scale)
    out_cached = jax.block_until_ready(cos_scratch_apply(f, w_norm, C))
    assert jnp.allclose(out_cached, out, atol=1e-6), "cached-prep mismatch"

    # --- multi-tile case exercising grid-order selection / padding ---------
    B2, C2 = 40, 300
    f2 = jax.random.normal(k_f2, (B2, E), dtype=jnp.float32)
    w2 = init_fc_weight(k_w2, C2, E)
    ref2 = reference_forward(f2, w2, scale)
    out2 = jax.block_until_ready(
        cos_scratch_forward(f2, w2, scale, tile_b=16, tile_c=128))
    assert out2.shape == (B2, C2)
    assert jnp.allclose(out2, ref2, atol=2.0, rtol=5e-2), "multi-tile mismatch"

    print("KERNEL_OK")
</pallas_src>

<mosaic_0001>
module attributes {stable_mosaic.version = 11 : i64} {
  func.func @_normalize_scale_kernel(%arg0: i32, %arg1: memref<256x256xf32, #tpu.memory_space<vmem>>, %arg2: memref<256x256xbf16, #tpu.memory_space<vmem>>) attributes {dimension_semantics = [#tpu.dimension_semantics<parallel>], iteration_bounds = array<i64: 1>, scalar_prefetch = 0 : i64, scratch_operands = 0 : i64, tpu.core_type = #tpu.core_type<tc>, window_params = [{transform_indices = @transform_0, window_bounds = array<i64: 256, 256>}, {transform_indices = @transform_1, window_bounds = array<i64: 256, 256>}]} {
    %c0 = arith.constant 0 : index
    %c0_0 = arith.constant 0 : index
    %0 = vector.load %arg1[%c0, %c0_0] : memref<256x256xf32, #tpu.memory_space<vmem>>, vector<256x256xf32>
    %1 = arith.mulf %0, %0 : vector<256x256xf32>
    %cst = arith.constant dense<0.000000e+00> : vector<256xf32>
    %2 = vector.multi_reduction <add>, %1, %cst [1] : vector<256x256xf32> to vector<256xf32>
    %3 = vector.shape_cast %2 : vector<256xf32> to vector<256x1xf32>
    %cst_1 = arith.constant 1.000000e-24 : f32
    %4 = vector.broadcast %cst_1 : f32 to vector<256x1xf32>
    %5 = arith.maximumf %3, %4 : vector<256x1xf32>
    %6 = math.rsqrt %5 : vector<256x1xf32>
    %cst_2 = arith.constant 1.000000e+02 : f32
    %7 = vector.broadcast %cst_2 : f32 to vector<256x1xf32>
    %8 = arith.mulf %7, %6 : vector<256x1xf32>
    %9 = vector.broadcast %8 : vector<256x1xf32> to vector<256x256xf32>
    %10 = arith.mulf %0, %9 : vector<256x256xf32>
    %11 = arith.truncf %10 : vector<256x256xf32> to vector<256x256xbf16>
    %c0_3 = arith.constant 0 : index
    %c0_4 = arith.constant 0 : index
    %12 = vector.load %arg2[%c0_3, %c0_4] : memref<256x256xbf16, #tpu.memory_space<vmem>>, vector<256x256xbf16>
    tpu.vector_store %arg2[%c0_3, %c0_4], %11 {strides = array<i32>} : memref<256x256xbf16, #tpu.memory_space<vmem>>, vector<256x256xbf16>,
    return
  }
  func.func @transform_0(%arg0: i32) -> (i32, i32) {
    %c0_i32 = arith.constant 0 : i32
    %c0_i32_0 = arith.constant 0 : i32
    return %arg0, %c0_i32 : i32, i32
  }
  func.func @transform_1(%arg0: i32) -> (i32, i32) {
    %c0_i32 = arith.constant 0 : i32
    %c0_i32_0 = arith.constant 0 : i32
    return %arg0, %c0_i32 : i32, i32
  }
}

</mosaic_0001>

<llo_original>
// kernel: tpu_custom_call.1
$region0: #{tpu_custom_call.1}
  #allocation0 [shape = 'u32[]', space=smem, size = 0x4, offset = 0x4, fixed_abs, tag = 'smem constant byte address 0x4 - core index']
  #allocation1 [shape = 'u32[144,128]{1,0:T(1,128)}', space=vmem, size = 0x12000, scoped, tag = 'internal scratch']
  %s0 = inlined_call_operand.hbm [shape: f32[256,256], index: 0, kind: input, shape index: {}]
  %s1 = inlined_call_operand.hbm [shape: bf16[256,256], index: 1, kind: output, shape index: {}]
  %s2 = sld [smem:[#allocation0]]
  $region18: #{tpu_custom_call.1} parent=0
    _
  %s4 = ssub.s32 1, %s2
  %s5 = scalar_select 0, %s4, %s2
  $region1: #{tpu_custom_call.1} parent=0
    #allocation2 [shape = 'u8[262144]{0}', space=vmem, size = 0x40000, scoped, tag = 'input window, operand 0, single buffered']
    #allocation3 [shape = 's32[1]{0}', space=sflag, size = 0x4, scoped, tag = 'scoped memory for tpu_custom_call.1']
    #allocation4 [shape = 's32[1]{0}', space=sflag, size = 0x4, scoped, tag = 'scoped memory for tpu_custom_call.1']
    #allocation5 [shape = 'u8[131072]{0}', space=vmem, size = 0x20000, scoped, tag = 'output window, operand 0, single buffered']
    %6 = vsyncpa [#allocation3], 0
    %7 = vsyncpa [#allocation4], 0
    // Predicated region
    $region2: #{tpu_custom_call.1} parent=1 // pred_check
      _
    $region3: #{tpu_custom_call.1} parent=1 // pred_check_branch
      %9 = sbr.rel (0) target = $region5
    $region4: #{tpu_custom_call.1} parent=1 // pred_region
      %s11 = ssub.s32 8192, 8192
      %12 = vsyncadd [#allocation3], %s11
      %s13 = sshll.u32 [#allocation2], 4
      %s14 = int_to_ptr.vmem [resolvable:$true] %s13
      %19 = dma.hbm_to_vmem [thread:$0]  %s0, 8192, %s14, [#allocation3], 256, 256, 16
    $region5: #{tpu_custom_call.1} parent=1 // pred_fallthru
      _
    // Predicated region
    $region6: #{tpu_custom_call.1} parent=1 // pred_check
      _
    $region7: #{tpu_custom_call.1} parent=1 // pred_check_branch
      %21 = sbr.rel (0) target = $region9
    $region8: #{tpu_custom_call.1} parent=1 // pred_region
      %22 = dma.done [#allocation3], 8192
    $region9: #{tpu_custom_call.1} parent=1 // pred_fallthru
      _
    %v23 = vld [vmem:[#allocation2] sm:$0xff]
    %v24 = vld [vmem:[#allocation2 + $0x8] sm:$0xff]
    %v25 = vld [vmem:[#allocation2 + $0x10] sm:$0xff]
    %v26 = vld [vmem:[#allocation2 + $0x18] sm:$0xff]
    %v27 = vld [vmem:[#allocation2 + $0x20] sm:$0xff]
    %v28 = vld [vmem:[#allocation2 + $0x28] sm:$0xff]
    %v29 = vld [vmem:[#allocation2 + $0x30] sm:$0xff]
    %v30 = vld [vmem:[#allocation2 + $0x38] sm:$0xff]
    %v31 = vld [vmem:[#allocation2 + $0x40] sm:$0xff]
    %v32 = vld [vmem:[#allocation2 + $0x48] sm:$0xff]
    %v33 = vld [vmem:[#allocation2 + $0x50] sm:$0xff]
    %v34 = vld [vmem:[#allocation2 + $0x58] sm:$0xff]
    %v35 = vld [vmem:[#allocation2 + $0x60] sm:$0xff]
    %v36 = vld [vmem:[#allocation2 + $0x68] sm:$0xff]
    %v37 = vld [vmem:[#allocation2 + $0x70] sm:$0xff]
    %v38 = vld [vmem:[#allocation2 + $0x78] sm:$0xff]
    %v39 = vld [vmem:[#allocation2 + $0x80] sm:$0xff]
    %v40 = vld [vmem:[#allocation2 + $0x88] sm:$0xff]
    %v41 = vld [vmem:[#allocation2 + $0x90] sm:$0xff]
    %v42 = vld [vmem:[#allocation2 + $0x98] sm:$0xff]
    %v43 = vld [vmem:[#allocation2 + $0xa0] sm:$0xff]
    %v44 = vld [vmem:[#allocation2 + $0xa8] sm:$0xff]
    %v45 = vld [vmem:[#allocation2 + $0xb0] sm:$0xff]
    %v46 = vld [vmem:[#allocation2 + $0xb8] sm:$0xff]
    %v47 = vld [vmem:[#allocation2 + $0xc0] sm:$0xff]
    %v48 = vld [vmem:[#allocation2 + $0xc8] sm:$0xff]
    %v49 = vld [vmem:[#allocation2 + $0xd0] sm:$0xff]
    %v50 = vld [vmem:[#allocation2 + $0xd8] sm:$0xff]
    %v51 = vld [vmem:[#allocation2 + $0xe0] sm:$0xff]
    %v52 = vld [vmem:[#allocation2 + $0xe8] sm:$0xff]
    %v53 = vld [vmem:[#allocation2 + $0xf0] sm:$0xff]
    %v54 = vld [vmem:[#allocation2 + $0xf8] sm:$0xff]
    %v55 = vld [vmem:[#allocation2 + $0x100] sm:$0xff]
    %v56 = vld [vmem:[#allocation2 + $0x108] sm:$0xff]
    %v57 = vld [vmem:[#allocation2 + $0x110] sm:$0xff]
    %v58 = vld [vmem:[#allocation2 + $0x118] sm:$0xff]
    %v59 = vld [vmem:[#allocation2 + $0x120] sm:$0xff]
    %v60 = vld [vmem:[#allocation2 + $0x128] sm:$0xff]
    %v61 = vld [vmem:[#allocation2 + $0x130] sm:$0xff]
    %v62 = vld [vmem:[#allocation2 + $0x138] sm:$0xff]
    %v63 = vld [vmem:[#allocation2 + $0x140] sm:$0xff]
    %v64 = vld [vmem:[#allocation2 + $0x148] sm:$0xff]
    %v65 = vld [vmem:[#allocation2 + $0x150] sm:$0xff]
    %v66 = vld [vmem:[#allocation2 + $0x158] sm:$0xff]
    %v67 = vld [vmem:[#allocation2 + $0x160] sm:$0xff]
    %v68 = vld [vmem:[#allocation2 + $0x168] sm:$0xff]
    %v69 = vld [vmem:[#allocation2 + $0x170] sm:$0xff]
    %v70 = vld [vmem:[#allocation2 + $0x178] sm:$0xff]
    %v71 = vld [vmem:[#allocation2 + $0x180] sm:$0xff]
    %v72 = vld [vmem:[#allocation2 + $0x188] sm:$0xff]
    %v73 = vld [vmem:[#allocation2 + $0x190] sm:$0xff]
    %v74 = vld [vmem:[#allocation2 + $0x198] sm:$0xff]
    %v75 = vld [vmem:[#allocation2 + $0x1a0] sm:$0xff]
    %v76 = vld [vmem:[#allocation2 + $0x1a8] sm:$0xff]
    %v77 = vld [vmem:[#allocation2 + $0x1b0] sm:$0xff]
    %v78 = vld [vmem:[#allocation2 + $0x1b8] sm:$0xff]
    %v79 = vld [vmem:[#allocation2 + $0x1c0] sm:$0xff]
    %v80 = vld [vmem:[#allocation2 + $0x1c8] sm:$0xff]
    %v81 = vld [vmem:[#allocation2 + $0x1d0] sm:$0xff]
    %v82 = vld [vmem:[#allocation2 + $0x1d8] sm:$0xff]
    %v83 = vld [vmem:[#allocation2 + $0x1e0] sm:$0xff]
    %v84 = vld [vmem:[#allocation2 + $0x1e8] sm:$0xff]
    %v85 = vld [vmem:[#allocation2 + $0x1f0] sm:$0xff]
    %v86 = vld [vmem:[#allocation2 + $0x1f8] sm:$0xff]
    %v87 = vmul.f32 %v23, %v23
    %v88 = vmul.f32 %v24, %v24
    %v89 = vmul.f32 %v25, %v25
    %v90 = vmul.f32 %v26, %v26
    %v91 = vmul.f32 %v27, %v27
    %v92 = vmul.f32 %v28, %v28
    %v93 = vmul.f32 %v29, %v29
    %v94 = vmul.f32 %v30, %v30
    %v95 = vmul.f32 %v31, %v31
    %v96 = vmul.f32 %v32, %v32
    %v97 = vmul.f32 %v33, %v33
    %v98 = vmul.f32 %v34, %v34
    %v99 = vmul.f32 %v35, %v35
    %v100 = vmul.f32 %v36, %v36
    %v101 = vmul.f32 %v37, %v37
    %v102 = vmul.f32 %v38, %v38
    %v103 = vmul.f32 %v39, %v39
    %v104 = vmul.f32 %v40, %v40
    %v105 = vmul.f32 %v41, %v41
    %v106 = vmul.f32 %v42, %v42
    %v107 = vmul.f32 %v43, %v43
    %v108 = vmul.f32 %v44, %v44
    %v109 = vmul.f32 %v45, %v45
    %v110 = vmul.f32 %v46, %v46
    %v111 = vmul.f32 %v47, %v47
    %v112 = vmul.f32 %v48, %v48
    %v113 = vmul.f32 %v49, %v49
    %v114 = vmul.f32 %v50, %v50
    %v115 = vmul.f32 %v51, %v51
    %v116 = vmul.f32 %v52, %v52
    %v117 = vmul.f32 %v53, %v53
    %v118 = vmul.f32 %v54, %v54
    %v119 = vmul.f32 %v55, %v55
    %v120 = vmul.f32 %v56, %v56
    %v121 = vmul.f32 %v57, %v57
    %v122 = vmul.f32 %v58, %v58
    %v123 = vmul.f32 %v59, %v59
    %v124 = vmul.f32 %v60, %v60
    %v125 = vmul.f32 %v61, %v61
    %v126 = vmul.f32 %v62, %v62
    %v127 = vmul.f32 %v63, %v63
    %v128 = vmul.f32 %v64, %v64
    %v129 = vmul.f32 %v65, %v65
    %v130 = vmul.f32 %v66, %v66
    %v131 = vmul.f32 %v67, %v67
    %v132 = vmul.f32 %v68, %v68
    %v133 = vmul.f32 %v69, %v69
    %v134 = vmul.f32 %v70, %v70
    %v135 = vmul.f32 %v71, %v71
    %v136 = vmul.f32 %v72, %v72
    %v137 = vmul.f32 %v73, %v73
    %v138 = vmul.f32 %v74, %v74
    %v139 = vmul.f32 %v75, %v75
    %v140 = vmul.f32 %v76, %v76
    %v141 = vmul.f32 %v77, %v77
    %v142 = vmul.f32 %v78, %v78
    %v143 = vmul.f32 %v79, %v79
    %v144 = vmul.f32 %v80, %v80
    %v145 = vmul.f32 %v81, %v81
    %v146 = vmul.f32 %v82, %v82
    %v147 = vmul.f32 %v83, %v83
    %v148 = vmul.f32 %v84, %v84
    %v149 = vmul.f32 %v85, %v85
    %v150 = vmul.f32 %v86, %v86
    %v151 = vadd.f32 %v87, %v88
    %152 = vadd.xlane.f32.xlu0 %v151
    %v153 = vpop.xlane.xlu0 %152
    %v154 = vadd.f32 %v89, %v90
    %155 = vadd.xlane.f32.xlu0 %v154
    %v156 = vpop.xlane.xlu0 %155
    %v157 = vadd.f32 %v91, %v92
    %158 = vadd.xlane.f32.xlu0 %v157
    %v159 = vpop.xlane.xlu0 %158
    %v160 = vadd.f32 %v93, %v94
    %161 = vadd.xlane.f32.xlu0 %v160
    %v162 = vpop.xlane.xlu0 %161
    %v163 = vadd.f32 %v95, %v96
    %164 = vadd.xlane.f32.xlu0 %v163
    %v165 = vpop.xlane.xlu0 %164
    %v166 = vadd.f32 %v97, %v98
    %167 = vadd.xlane.f32.xlu0 %v166
    %v168 = vpop.xlane.xlu0 %167
    %v169 = vadd.f32 %v99, %v100
    %170 = vadd.xlane.f32.xlu0 %v169
    %v171 = vpop.xlane.xlu0 %170
    %v172 = vadd.f32 %v101, %v102
    %173 = vadd.xlane.f32.xlu0 %v172
    %v174 = vpop.xlane.xlu0 %173
    %v175 = vadd.f32 %v103, %v104
    %176 = vadd.xlane.f32.xlu0 %v175
    %v177 = vpop.xlane.xlu0 %176
    %v178 = vadd.f32 %v105, %v106
    %179 = vadd.xlane.f32.xlu0 %v178
    %v180 = vpop.xlane.xlu0 %179
    %v181 = vadd.f32 %v107, %v108
    %182 = vadd.xlane.f32.xlu0 %v181
    %v183 = vpop.xlane.xlu0 %182
    %v184 = vadd.f32 %v109, %v110
    %185 = vadd.xlane.f32.xlu0 %v184
    %v186 = vpop.xlane.xlu0 %185
    %v187 = vadd.f32 %v111, %v112
    %188 = vadd.xlane.f32.xlu0 %v187
    %v189 = vpop.xlane.xlu0 %188
    %v190 = vadd.f32 %v113, %v114
    %191 = vadd.xlane.f32.xlu0 %v190
    %v192 = vpop.xlane.xlu0 %191
    %v193 = vadd.f32 %v115, %v116
    %194 = vadd.xlane.f32.xlu0 %v193
    %v195 = vpop.xlane.xlu0 %194
    %v196 = vadd.f32 %v117, %v118
    %197 = vadd.xlane.f32.xlu0 %v196
    %v198 = vpop.xlane.xlu0 %197
    %v199 = vadd.f32 %v119, %v120
    %200 = vadd.xlane.f32.xlu0 %v199
    %v201 = vpop.xlane.xlu0 %200
    %v202 = vadd.f32 %v121, %v122
    %203 = vadd.xlane.f32.xlu0 %v202
    %v204 = vpop.xlane.xlu0 %203
    %v205 = vadd.f32 %v123, %v124
    %206 = vadd.xlane.f32.xlu0 %v205
    %v207 = vpop.xlane.xlu0 %206
    %v208 = vadd.f32 %v125, %v126
    %209 = vadd.xlane.f32.xlu0 %v208
    %v210 = vpop.xlane.xlu0 %209
    %v211 = vadd.f32 %v127, %v128
    %212 = vadd.xlane.f32.xlu0 %v211
    %v213 = vpop.xlane.xlu0 %212
    %v214 = vadd.f32 %v129, %v130
    %215 = vadd.xlane.f32.xlu0 %v214
    %v216 = vpop.xlane.xlu0 %215
    %v217 = vadd.f32 %v131, %v132
    %218 = vadd.xlane.f32.xlu0 %v217
    %v219 = vpop.xlane.xlu0 %218
    %v220 = vadd.f32 %v133, %v134
    %221 = vadd.xlane.f32.xlu0 %v220
    %v222 = vpop.xlane.xlu0 %221
    %v223 = vadd.f32 %v135, %v136
    %224 = vadd.xlane.f32.xlu0 %v223
    %v225 = vpop.xlane.xlu0 %224
    %v226 = vadd.f32 %v137, %v138
    %227 = vadd.xlane.f32.xlu0 %v226
    %v228 = vpop.xlane.xlu0 %227
    %v229 = vadd.f32 %v139, %v140
    %230 = vadd.xlane.f32.xlu0 %v229
    %v231 = vpop.xlane.xlu0 %230
    %v232 = vadd.f32 %v141, %v142
    %233 = vadd.xlane.f32.xlu0 %v232
    %v234 = vpop.xlane.xlu0 %233
    %v235 = vadd.f32 %v143, %v144
    %236 = vadd.xlane.f32.xlu0 %v235
    %v237 = vpop.xlane.xlu0 %236
    %v238 = vadd.f32 %v145, %v146
    %239 = vadd.xlane.f32.xlu0 %v238
    %v240 = vpop.xlane.xlu0 %239
    %v241 = vadd.f32 %v147, %v148
    %242 = vadd.xlane.f32.xlu0 %v241
    %v243 = vpop.xlane.xlu0 %242
    %v244 = vadd.f32 %v149, %v150
    %245 = vadd.xlane.f32.xlu0 %v244
    %v246 = vpop.xlane.xlu0 %245
    %v247 = vmax.f32 %v153, 1e-24
    %v248 = vmax.f32 %v156, 1e-24
    %v249 = vmax.f32 %v159, 1e-24
    %v250 = vmax.f32 %v162, 1e-24
    %v251 = vmax.f32 %v165, 1e-24
    %v252 = vmax.f32 %v168, 1e-24
    %v253 = vmax.f32 %v171, 1e-24
    %v254 = vmax.f32 %v174, 1e-24
    %v255 = vmax.f32 %v177, 1e-24
    %v256 = vmax.f32 %v180, 1e-24
    %v257 = vmax.f32 %v183, 1e-24
    %v258 = vmax.f32 %v186, 1e-24
    %v259 = vmax.f32 %v189, 1e-24
    %v260 = vmax.f32 %v192, 1e-24
    %v261 = vmax.f32 %v195, 1e-24
    %v262 = vmax.f32 %v198, 1e-24
    %v263 = vmax.f32 %v201, 1e-24
    %v264 = vmax.f32 %v204, 1e-24
    %v265 = vmax.f32 %v207, 1e-24
    %v266 = vmax.f32 %v210, 1e-24
    %v267 = vmax.f32 %v213, 1e-24
    %v268 = vmax.f32 %v216, 1e-24
    %v269 = vmax.f32 %v219, 1e-24
    %v270 = vmax.f32 %v222, 1e-24
    %v271 = vmax.f32 %v225, 1e-24
    %v272 = vmax.f32 %v228, 1e-24
    %v273 = vmax.f32 %v231, 1e-24
    %v274 = vmax.f32 %v234, 1e-24
    %v275 = vmax.f32 %v237, 1e-24
    %v276 = vmax.f32 %v240, 1e-24
    %v277 = vmax.f32 %v243, 1e-24
    %v278 = vmax.f32 %v246, 1e-24
    %v279 = vrsqrt.pop %v247
    %v280 = vrsqrt.pop %v248
    %v281 = vrsqrt.pop %v249
    %v282 = vrsqrt.pop %v250
    %v283 = vrsqrt.pop %v251
    %v284 = vrsqrt.pop %v252
    %v285 = vrsqrt.pop %v253
    %v286 = vrsqrt.pop %v254
    %v287 = vrsqrt.pop %v255
    %v288 = vrsqrt.pop %v256
    %v289 = vrsqrt.pop %v257
    %v290 = vrsqrt.pop %v258
    %v291 = vrsqrt.pop %v259
    %v292 = vrsqrt.pop %v260
    %v293 = vrsqrt.pop %v261
    %v294 = vrsqrt.pop %v262
    %v295 = vrsqrt.pop %v263
    %v296 = vrsqrt.pop %v264
    %v297 = vrsqrt.pop %v265
    %v298 = vrsqrt.pop %v266
    %v299 = vrsqrt.pop %v267
    %v300 = vrsqrt.pop %v268
    %v301 = vrsqrt.pop %v269
    %v302 = vrsqrt.pop %v270
    %v303 = vrsqrt.pop %v271
    %v304 = vrsqrt.pop %v272
    %v305 = vrsqrt.pop %v273
    %v306 = vrsqrt.pop %v274
    %v307 = vrsqrt.pop %v275
    %v308 = vrsqrt.pop %v276
    %v309 = vrsqrt.pop %v277
    %v310 = vrsqrt.pop %v278
    %v311 = vmul.f32 %v279, 100.0
    %v312 = vmul.f32 %v280, 100.0
    %v313 = vmul.f32 %v281, 100.0
    %v314 = vmul.f32 %v282, 100.0
    %v315 = vmul.f32 %v283, 100.0
    %v316 = vmul.f32 %v284, 100.0
    %v317 = vmul.f32 %v285, 100.0
    %v318 = vmul.f32 %v286, 100.0
    %v319 = vmul.f32 %v287, 100.0
    %v320 = vmul.f32 %v288, 100.0
    %v321 = vmul.f32 %v289, 100.0
    %v322 = vmul.f32 %v290, 100.0
    %v323 = vmul.f32 %v291, 100.0
    %v324 = vmul.f32 %v292, 100.0
    %v325 = vmul.f32 %v293, 100.0
    %v326 = vmul.f32 %v294, 100.0
    %v327 = vmul.f32 %v295, 100.0
    %v328 = vmul.f32 %v296, 100.0
    %v329 = vmul.f32 %v297, 100.0
    %v330 = vmul.f32 %v298, 100.0
    %v331 = vmul.f32 %v299, 100.0
    %v332 = vmul.f32 %v300, 100.0
    %v333 = vmul.f32 %v301, 100.0
    %v334 = vmul.f32 %v302, 100.0
    %v335 = vmul.f32 %v303, 100.0
    %v336 = vmul.f32 %v304, 100.0
    %v337 = vmul.f32 %v305, 100.0
    %v338 = vmul.f32 %v306, 100.0
    %v339 = vmul.f32 %v307, 100.0
    %v340 = vmul.f32 %v308, 100.0
    %v341 = vmul.f32 %v309, 100.0
    %v342 = vmul.f32 %v310, 100.0
    %v343 = vmul.f32 %v23, %v311
    %v344 = vmul.f32 %v24, %v311
    %v345 = vmul.f32 %v25, %v312
    %v346 = vmul.f32 %v26, %v312
    %v347 = vmul.f32 %v27, %v313
    %v348 = vmul.f32 %v28, %v313
    %v349 = vmul.f32 %v29, %v314
    %v350 = vmul.f32 %v30, %v314
    %v351 = vmul.f32 %v31, %v315
    %v352 = vmul.f32 %v32, %v315
    %v353 = vmul.f32 %v33, %v316
    %v354 = vmul.f32 %v34, %v316
    %v355 = vmul.f32 %v35, %v317
    %v356 = vmul.f32 %v36, %v317
    %v357 = vmul.f32 %v37, %v318
    %v358 = vmul.f32 %v38, %v318
    %v359 = vmul.f32 %v39, %v319
    %v360 = vmul.f32 %v40, %v319
    %v361 = vmul.f32 %v41, %v320
    %v362 = vmul.f32 %v42, %v320
    %v363 = vmul.f32 %v43, %v321
    %v364 = vmul.f32 %v44, %v321
    %v365 = vmul.f32 %v45, %v322
    %v366 = vmul.f32 %v46, %v322
    %v367 = vmul.f32 %v47, %v323
    %v368 = vmul.f32 %v48, %v323
    %v369 = vmul.f32 %v49, %v324
    %v370 = vmul.f32 %v50, %v324
    %v371 = vmul.f32 %v51, %v325
    %v372 = vmul.f32 %v52, %v325
    %v373 = vmul.f32 %v53, %v326
    %v374 = vmul.f32 %v54, %v326
    %v375 = vmul.f32 %v55, %v327
    %v376 = vmul.f32 %v56, %v327
    %v377 = vmul.f32 %v57, %v328
    %v378 = vmul.f32 %v58, %v328
    %v379 = vmul.f32 %v59, %v329
    %v380 = vmul.f32 %v60, %v329
    %v381 = vmul.f32 %v61, %v330
    %v382 = vmul.f32 %v62, %v330
    %v383 = vmul.f32 %v63, %v331
    %v384 = vmul.f32 %v64, %v331
    %v385 = vmul.f32 %v65, %v332
    %v386 = vmul.f32 %v66, %v332
    %v387 = vmul.f32 %v67, %v333
    %v388 = vmul.f32 %v68, %v333
    %v389 = vmul.f32 %v69, %v334
    %v390 = vmul.f32 %v70, %v334
    %v391 = vmul.f32 %v71, %v335
    %v392 = vmul.f32 %v72, %v335
    %v393 = vmul.f32 %v73, %v336
    %v394 = vmul.f32 %v74, %v336
    %v395 = vmul.f32 %v75, %v337
    %v396 = vmul.f32 %v76, %v337
    %v397 = vmul.f32 %v77, %v338
    %v398 = vmul.f32 %v78, %v338
    %v399 = vmul.f32 %v79, %v339
    %v400 = vmul.f32 %v80, %v339
    %v401 = vmul.f32 %v81, %v340
    %v402 = vmul.f32 %v82, %v340
    %v403 = vmul.f32 %v83, %v341
    %v404 = vmul.f32 %v84, %v341
    %v405 = vmul.f32 %v85, %v342
    %v406 = vmul.f32 %v86, %v342
    %v407 = vpack.c.bf16 %v345, %v343
    %v408 = vpack.c.bf16 %v346, %v344
    %v409 = vpack.c.bf16 %v349, %v347
    %v410 = vpack.c.bf16 %v350, %v348
    %v411 = vpack.c.bf16 %v353, %v351
    %v412 = vpack.c.bf16 %v354, %v352
    %v413 = vpack.c.bf16 %v357, %v355
    %v414 = vpack.c.bf16 %v358, %v356
    %v415 = vpack.c.bf16 %v361, %v359
    %v416 = vpack.c.bf16 %v362, %v360
    %v417 = vpack.c.bf16 %v365, %v363
    %v418 = vpack.c.bf16 %v366, %v364
    %v419 = vpack.c.bf16 %v369, %v367
    %v420 = vpack.c.bf16 %v370, %v368
    %v421 = vpack.c.bf16 %v373, %v371
    %v422 = vpack.c.bf16 %v374, %v372
    %v423 = vpack.c.bf16 %v377, %v375
    %v424 = vpack.c.bf16 %v378, %v376
    %v425 = vpack.c.bf16 %v381, %v379
    %v426 = vpack.c.bf16 %v382, %v380
    %v427 = vpack.c.bf16 %v385, %v383
    %v428 = vpack.c.bf16 %v386, %v384
    %v429 = vpack.c.bf16 %v389, %v387
    %v430 = vpack.c.bf16 %v390, %v388
    %v431 = vpack.c.bf16 %v393, %v391
    %v432 = vpack.c.bf16 %v394, %v392
    %v433 = vpack.c.bf16 %v397, %v395
    %v434 = vpack.c.bf16 %v398, %v396
    %v435 = vpack.c.bf16 %v401, %v399
    %v436 = vpack.c.bf16 %v402, %v400
    %v437 = vpack.c.bf16 %v405, %v403
    %v438 = vpack.c.bf16 %v406, %v404
    %v471 = vunpack.c.l.b16 %v407
    %v472 = vunpack.c.l.b16 %v408
    %v473 = vunpack.c.h.b16 %v407
    %v474 = vunpack.c.h.b16 %v408
    %v475 = vunpack.c.l.b16 %v409
    %v476 = vunpack.c.l.b16 %v410
    %v477 = vunpack.c.h.b16 %v409
    %v478 = vunpack.c.h.b16 %v410
    %v479 = vunpack.c.l.b16 %v411
    %v480 = vunpack.c.l.b16 %v412
    %v481 = vunpack.c.h.b16 %v411
    %v482 = vunpack.c.h.b16 %v412
    %v483 = vunpack.c.l.b16 %v413
    %v484 = vunpack.c.l.b16 %v414
    %v485 = vunpack.c.h.b16 %v413
    %v486 = vunpack.c.h.b16 %v414
    %v487 = vunpack.c.l.b16 %v415
    %v488 = vunpack.c.l.b16 %v416
    %v489 = vunpack.c.h.b16 %v415
    %v490 = vunpack.c.h.b16 %v416
    %v491 = vunpack.c.l.b16 %v417
    %v492 = vunpack.c.l.b16 %v418
    %v493 = vunpack.c.h.b16 %v417
    %v494 = vunpack.c.h.b16 %v418
    %v495 = vunpack.c.l.b16 %v419
    %v496 = vunpack.c.l.b16 %v420
    %v497 = vunpack.c.h.b16 %v419
    %v498 = vunpack.c.h.b16 %v420
    %v499 = vunpack.c.l.b16 %v421
    %v500 = vunpack.c.l.b16 %v422
    %v501 = vunpack.c.h.b16 %v421
    %v502 = vunpack.c.h.b16 %v422
    %v503 = vunpack.c.l.b16 %v423
    %v504 = vunpack.c.l.b16 %v424
    %v505 = vunpack.c.h.b16 %v423
    %v506 = vunpack.c.h.b16 %v424
    %v507 = vunpack.c.l.b16 %v425
    %v508 = vunpack.c.l.b16 %v426
    %v509 = vunpack.c.h.b16 %v425
    %v510 = vunpack.c.h.b16 %v426
    %v511 = vunpack.c.l.b16 %v427
    %v512 = vunpack.c.l.b16 %v428
    %v513 = vunpack.c.h.b16 %v427
    %v514 = vunpack.c.h.b16 %v428
    %v515 = vunpack.c.l.b16 %v429
    %v516 = vunpack.c.l.b16 %v430
    %v517 = vunpack.c.h.b16 %v429
    %v518 = vunpack.c.h.b16 %v430
    %v519 = vunpack.c.l.b16 %v431
    %v520 = vunpack.c.l.b16 %v432
    %v521 = vunpack.c.h.b16 %v431
    %v522 = vunpack.c.h.b16 %v432
    %v523 = vunpack.c.l.b16 %v433
    %v524 = vunpack.c.l.b16 %v434
    %v525 = vunpack.c.h.b16 %v433
    %v526 = vunpack.c.h.b16 %v434
    %v527 = vunpack.c.l.b16 %v435
    %v528 = vunpack.c.l.b16 %v436
    %v529 = vunpack.c.h.b16 %v435
    %v530 = vunpack.c.h.b16 %v436
    %v531 = vunpack.c.l.b16 %v437
    %v532 = vunpack.c.l.b16 %v438
    %v533 = vunpack.c.h.b16 %v437
    %v534 = vunpack.c.h.b16 %v438
    %v535 = vpack.c.b16 %v472, %v471
    %v536 = vpack.c.b16 %v474, %v473
    %v537 = vpack.c.b16 %v476, %v475
    %v538 = vpack.c.b16 %v478, %v477
    %v539 = vpack.c.b16 %v480, %v479
    %v540 = vpack.c.b16 %v482, %v481
    %v541 = vpack.c.b16 %v484, %v483
    %v542 = vpack.c.b16 %v486, %v485
    %v543 = vpack.c.b16 %v488, %v487
    %v544 = vpack.c.b16 %v490, %v489
    %v545 = vpack.c.b16 %v492, %v491
    %v546 = vpack.c.b16 %v494, %v493
    %v547 = vpack.c.b16 %v496, %v495
    %v548 = vpack.c.b16 %v498, %v497
    %v549 = vpack.c.b16 %v500, %v499
    %v550 = vpack.c.b16 %v502, %v501
    %v551 = vpack.c.b16 %v504, %v503
    %v552 = vpack.c.b16 %v506, %v505
    %v553 = vpack.c.b16 %v508, %v507
    %v554 = vpack.c.b16 %v510, %v509
    %v555 = vpack.c.b16 %v512, %v511
    %v556 = vpack.c.b16 %v514, %v513
    %v557 = vpack.c.b16 %v516, %v515
    %v558 = vpack.c.b16 %v518, %v517
    %v559 = vpack.c.b16 %v520, %v519
    %v560 = vpack.c.b16 %v522, %v521
    %v561 = vpack.c.b16 %v524, %v523
    %v562 = vpack.c.b16 %v526, %v525
    %v563 = vpack.c.b16 %v528, %v527
    %v564 = vpack.c.b16 %v530, %v529
    %v565 = vpack.c.b16 %v532, %v531
    %v566 = vpack.c.b16 %v534, %v533
    %599 = vst [vmem:[#allocation5] sm:$0xff] %v535
    %600 = vst [vmem:[#allocation5 + $0x8] sm:$0xff] %v536
    %601 = vst [vmem:[#allocation5 + $0x10] sm:$0xff] %v537
    %602 = vst [vmem:[#allocation5 + $0x18] sm:$0xff] %v538
    %603 = vst [vmem:[#allocation5 + $0x20] sm:$0xff] %v539
    %604 = vst [vmem:[#allocation5 + $0x28] sm:$0xff] %v540
    %605 = vst [vmem:[#allocation5 + $0x30] sm:$0xff] %v541
    %606 = vst [vmem:[#allocation5 + $0x38] sm:$0xff] %v542
    %607 = vst [vmem:[#allocation5 + $0x40] sm:$0xff] %v543
    %608 = vst [vmem:[#allocation5 + $0x48] sm:$0xff] %v544
    %609 = vst [vmem:[#allocation5 + $0x50] sm:$0xff] %v545
    %610 = vst [vmem:[#allocation5 + $0x58] sm:$0xff] %v546
    %611 = vst [vmem:[#allocation5 + $0x60] sm:$0xff] %v547
    %612 = vst [vmem:[#allocation5 + $0x68] sm:$0xff] %v548
    %613 = vst [vmem:[#allocation5 + $0x70] sm:$0xff] %v549
    %614 = vst [vmem:[#allocation5 + $0x78] sm:$0xff] %v550
    %615 = vst [vmem:[#allocation5 + $0x80] sm:$0xff] %v551
    %616 = vst [vmem:[#allocation5 + $0x88] sm:$0xff] %v552
    %617 = vst [vmem:[#allocation5 + $0x90] sm:$0xff] %v553
    %618 = vst [vmem:[#allocation5 + $0x98] sm:$0xff] %v554
    %619 = vst [vmem:[#allocation5 + $0xa0] sm:$0xff] %v555
    %620 = vst [vmem:[#allocation5 + $0xa8] sm:$0xff] %v556
    %621 = vst [vmem:[#allocation5 + $0xb0] sm:$0xff] %v557
    %622 = vst [vmem:[#allocation5 + $0xb8] sm:$0xff] %v558
    %623 = vst [vmem:[#allocation5 + $0xc0] sm:$0xff] %v559
    %624 = vst [vmem:[#allocation5 + $0xc8] sm:$0xff] %v560
    %625 = vst [vmem:[#allocation5 + $0xd0] sm:$0xff] %v561
    %626 = vst [vmem:[#allocation5 + $0xd8] sm:$0xff] %v562
    %627 = vst [vmem:[#allocation5 + $0xe0] sm:$0xff] %v563
    %628 = vst [vmem:[#allocation5 + $0xe8] sm:$0xff] %v564
    %629 = vst [vmem:[#allocation5 + $0xf0] sm:$0xff] %v565
    %630 = vst [vmem:[#allocation5 + $0xf8] sm:$0xff] %v566
    // Predicated region
    $region10: #{tpu_custom_call.1} parent=1 // pred_check
      _
    $region11: #{tpu_custom_call.1} parent=1 // pred_check_branch
      %632 = sbr.rel (0) target = $region13
    $region12: #{tpu_custom_call.1} parent=1 // pred_region
      %s634 = ssub.s32 4096, 4096
      %635 = vsyncadd [#allocation4], %s634
      %s636 = sshll.u32 [#allocation5], 4
      %s637 = int_to_ptr.vmem [resolvable:$true] %s636
      %642 = dma.vmem_to_hbm [thread:$0]  %s637, 4096, %s1, [#allocation4], 128, 128, 8
    $region13: #{tpu_custom_call.1} parent=1 // pred_fallthru
      _
    // Predicated region
    $region14: #{tpu_custom_call.1} parent=1 // pred_check
      _
    $region15: #{tpu_custom_call.1} parent=1 // pred_check_branch
      %644 = sbr.rel (0) target = $region17
    $region16: #{tpu_custom_call.1} parent=1 // pred_region
      %645 = dma.done [#allocation4], 4096
    $region17: #{tpu_custom_call.1} parent=1 // pred_fallthru
      _
    %646 = vsyncpa [#allocation3], 1
    %647 = vsyncpa [#allocation4], 1

</llo_original>
